<compile_context>
chip_gen: v7x
topology: tpu7x:2x2x1
jax: 0.10.0
libtpu: 0.0.40
codegen_flags: <defaults>
</compile_context>

<pallas_src>
import jax
import jax.numpy as jnp
from jax.experimental import pallas as pl
from jax.experimental.pallas import tpu as pltpu


# ------------------------------ helpers ------------------------------------ #

def _round_up(x, m):
    return ((x + m - 1) // m) * m


def _pad_cols(x, m_pad):
    pad = m_pad - x.shape[1]
    if pad == 0:
        return x
    return jnp.pad(x, ((0, 0), (0, pad)))


def _ce_tiling(n_rows, num_classes, itemsize):
    """Pick (tile_n, vmem_limit_bytes) for the CE pipeline.

    Budget accounts for the real (lane-padded) VMEM footprint of the
    double-buffered pipeline: logits block padded to round_up(C,128) lanes and
    the two (tile_n, 1) sidebands each padded to 128 lanes of 4B words.
    """
    try:
        info = pltpu.get_tpu_info()
        cap = int(getattr(info, "vmem_capacity_bytes", 64 * 1024 * 1024))
    except Exception:
        cap = 64 * 1024 * 1024                      # conservative (v7x) fallback

    c_pad = _round_up(num_classes, 128)
    per_row = 2 * (c_pad * itemsize + 2 * 128 * 4)  # x2 = double buffering
    budget = min(cap // 3, 32 * 1024 * 1024)        # ~21 MiB on v7x, 32 MiB v5e/v6e

    tile_n = max(32, min(int(budget // per_row), 8192))
    if tile_n >= n_rows:
        tile_n = n_rows                             # one step, block == full array
    else:
        tile_n = (tile_n // 32) * 32                # sublane multiple (f32 & bf16)

    vmem_limit = min(cap - 16 * 1024 * 1024, budget + 24 * 1024 * 1024)
    vmem_limit = max(vmem_limit, 32 * 1024 * 1024)
    return tile_n, int(vmem_limit)


# ----------------------------- fused kernel -------------------------------- #

def _make_kernel(tile_n, n_rows, needs_row_mask):
    """Grid axis 0 ("parallel") tiles the CE rows.  The location (MSE + GIoU)
    branch is tiny, lane-dense, and runs once on the LAST grid step."""

    def kernel(logits_ref, tgt_ref, smask_ref,
               locp_ref, locm_ref, loct_ref, locv_ref,
               ce_ref, mse_ref, giou_ref):
        pid = pl.program_id(0)
        nsteps = pl.num_programs(0)
        eps = 1e-7

        # Per-step loc partials default to zero; only the last step fills them.
        mse_ref[...] = jnp.zeros_like(mse_ref)
        giou_ref[...] = jnp.zeros_like(giou_ref)

        # ---- structure branch: one (tile_n, C) tile of masked cross-entropy ----
        x = logits_ref[...].astype(jnp.float32)         # cast in-kernel (bf16 ok)
        n, c = x.shape
        smask = smask_ref[...]                          # (tile_n, 1) f32
        if needs_row_mask:
            row = jax.lax.broadcasted_iota(jnp.int32, (n, 1), 0) + pid * tile_n
            valid = row < n_rows
            x = jnp.where(valid, x, 0.0)                # sanitize BEFORE exp
            smask = jnp.where(valid, smask, 0.0)        # tail contributes 0
        row_max = jnp.max(x, axis=-1, keepdims=True)
        lse = row_max + jnp.log(jnp.sum(jnp.exp(x - row_max), axis=-1,
                                        keepdims=True))
        col = jax.lax.broadcasted_iota(jnp.int32, (n, c), 1)
        onehot = (col == tgt_ref[...]).astype(jnp.float32)
        picked = jnp.sum(x * onehot, axis=-1, keepdims=True)
        ce_part = jnp.sum((lse - picked) * smask)
        ce_ref[...] = jnp.full(ce_ref.shape, ce_part, dtype=jnp.float32)

        # ---- location branch: coords on sublanes, boxes on 128-lane axis ----
        @pl.when(pid == nsteps - 1)
        def _loc():
            p = locp_ref[...] * locm_ref[...]           # (4, Mp)
            t = loct_ref[...]                           # (4, Mp)
            valid_col = locv_ref[...]                   # (1, Mp); 0 on padded cols

            d = p - t                                   # padded cols are 0 - 0
            mse_ref[...] = jnp.full(mse_ref.shape, jnp.sum(d * d),
                                    dtype=jnp.float32)

            px1, py1, px2, py2 = p[0:1, :], p[1:2, :], p[2:3, :], p[3:4, :]
            bx1, by1, bx2, by2 = t[0:1, :], t[1:2, :], t[2:3, :], t[3:4, :]

            # (a>=b)*a + (a<b)*b == max(a,b); (a>=b)*b + (a<b)*a == min(a,b)
            ix1 = jnp.maximum(px1, bx1)
            iy1 = jnp.maximum(py1, by1)
            ix2 = jnp.minimum(px2, bx2)
            iy2 = jnp.minimum(py2, by2)
            iw = jnp.maximum(ix2 - ix1 + 0.001, 0.0)    # clamp(.,0,1e10) -> max
            ih = jnp.maximum(iy2 - iy1 + 0.001, 0.0)
            inters = iw * ih
            uni = ((px2 - px1 + 0.001) * (py2 - py1 + 0.001)
                   + (bx2 - bx1 + 0.001) * (by2 - by1 + 0.001) - inters + eps)
            ious = inters / uni

            ex1 = jnp.minimum(px1, bx1)
            ey1 = jnp.minimum(py1, by1)
            ex2 = jnp.maximum(px2, bx2)
            ey2 = jnp.maximum(py2, by2)
            ew = jnp.maximum(ex2 - ex1 + 0.001, 0.0)
            eh = jnp.maximum(ey2 - ey1 + 0.001, 0.0)
            enclose = ew * eh + eps
            giou = ious - (enclose - uni) / enclose
            giou_ref[...] = jnp.full(giou_ref.shape,
                                     jnp.sum((1.0 - giou) * valid_col),
                                     dtype=jnp.float32)

    return kernel


def _fused_sums(logits, tgt, smask, locp, locm, loct, locv, *,
                tile_n, vmem_limit):
    n_rows, c = logits.shape
    _, m_pad = locp.shape
    num_steps = pl.cdiv(n_rows, tile_n)
    needs_row_mask = (n_rows % tile_n) != 0
    kernel = _make_kernel(tile_n, n_rows, needs_row_mask)

    part_shape = jax.ShapeDtypeStruct((num_steps, 1, 128), jnp.float32)
    part_spec = pl.BlockSpec((1, 1, 128), lambda i: (i, 0, 0))

    bytes_accessed = int(n_rows * c * logits.dtype.itemsize   # logits (native)
                         + n_rows * (4 + 4)                   # targets + mask
                         + 3 * 4 * m_pad * 4 + m_pad * 4      # loc arrays
                         + 3 * num_steps * 128 * 4)           # partial outputs
    cost = pl.CostEstimate(flops=int(6 * n_rows * c + 60 * m_pad),
                           transcendentals=int(n_rows * (c + 1)),
                           bytes_accessed=bytes_accessed)

    ce_p, mse_p, giou_p = pl.pallas_call(
        kernel,
        out_shape=(part_shape, part_shape, part_shape),
        grid=(num_steps,),
        in_specs=[
            pl.BlockSpec((tile_n, c), lambda i: (i, 0)),   # logits tile (native dtype)
            pl.BlockSpec((tile_n, 1), lambda i: (i, 0)),   # targets tile
            pl.BlockSpec((tile_n, 1), lambda i: (i, 0)),   # structure mask tile
            pl.BlockSpec((4, m_pad), lambda i: (0, 0)),    # loc preds (resident)
            pl.BlockSpec((4, m_pad), lambda i: (0, 0)),    # loc mask
            pl.BlockSpec((4, m_pad), lambda i: (0, 0)),    # loc targets
            pl.BlockSpec((1, m_pad), lambda i: (0, 0)),    # loc validity row
        ],
        out_specs=(part_spec, part_spec, part_spec),
        compiler_params=pltpu.CompilerParams(
            dimension_semantics=("parallel",),
            vmem_limit_bytes=vmem_limit),
        cost_estimate=cost,
    )(logits, tgt, smask, locp, locm, loct, locv)

    ce_sum = jnp.sum(ce_p[:, 0, 0])
    mse_sum = jnp.sum(mse_p[:, 0, 0])      # only the last step is non-zero
    giou_sum = jnp.sum(giou_p[:, 0, 0])
    return ce_sum, mse_sum, giou_sum


# ------------------------------- forward ----------------------------------- #

def table_attention_loss(predicts, batch, *, structure_weight, loc_weight,
                         use_giou=False, giou_weight=1.0, _force_tile_n=None):
    # ----- structure (cross-entropy) branch: native dtype, no padding -----
    structure_probs = jnp.asarray(predicts['structure_probs'])
    num_classes = structure_probs.shape[-1]
    logits = structure_probs.reshape(-1, num_classes)
    n_rows = logits.shape[0]
    tgt = jnp.asarray(batch[1]).astype(jnp.int32)[:, 1:].reshape(-1, 1)
    if len(batch) == 6:
        smask = jnp.asarray(batch[5]).astype(jnp.float32)[:, 1:].reshape(-1, 1)
    else:
        smask = jnp.ones((n_rows, 1), jnp.float32)

    tile_n, vmem_limit = _ce_tiling(n_rows, num_classes, logits.dtype.itemsize)
    if _force_tile_n is not None:      # test hook: exercise multi-tile / ragged tail
        tile_n = _force_tile_n

    # ----- location (MSE / GIoU) branch: lane-dense (4, M_pad) layout -----
    loc_preds = jnp.asarray(predicts['loc_preds'], jnp.float32)
    loc_targets = jnp.asarray(batch[2], jnp.float32)[:, 1:, :]
    loc_targets_mask = jnp.asarray(batch[4], jnp.float32)[:, 1:, :]
    m_rows = loc_preds.shape[0] * loc_preds.shape[1]
    m_pad = max(128, _round_up(m_rows, 128))
    locp = _pad_cols(loc_preds.reshape(m_rows, 4).T, m_pad)
    locm = _pad_cols(loc_targets_mask.reshape(m_rows, 4).T, m_pad)
    loct = _pad_cols(loc_targets.reshape(m_rows, 4).T, m_pad)
    locv = _pad_cols(jnp.ones((1, m_rows), jnp.float32), m_pad)

    ce_sum, mse_sum, giou_sum = _fused_sums(
        logits, tgt, smask, locp, locm, loct, locv,
        tile_n=tile_n, vmem_limit=vmem_limit)

    structure_loss = (ce_sum / n_rows) * structure_weight
    loc_loss = (mse_sum / (m_rows * 4)) * loc_weight

    if use_giou:
        loc_loss_giou = (giou_sum / m_rows) * giou_weight
        total_loss = structure_loss + loc_loss + loc_loss_giou
        return {'loss': total_loss, 'structure_loss': structure_loss,
                'loc_loss': loc_loss, 'loc_loss_giou': loc_loss_giou}
    total_loss = structure_loss + loc_loss
    return {'loss': total_loss, 'structure_loss': structure_loss,
            'loc_loss': loc_loss}


# --------------------------- pure-JAX reference ----------------------------- #

def _reference(predicts, batch, *, structure_weight, loc_weight,
               use_giou=False, giou_weight=1.0):
    sp = jnp.asarray(predicts['structure_probs'], jnp.float32)
    st = jnp.asarray(batch[1], jnp.int32)[:, 1:].reshape(-1)
    logits = sp.reshape(-1, sp.shape[-1])
    logp = jax.nn.log_softmax(logits, axis=-1)
    ce = -jnp.take_along_axis(logp, st[:, None], axis=1)[:, 0]
    if len(batch) == 6:
        sm = jnp.asarray(batch[5], jnp.float32)[:, 1:].reshape(-1)
        ce = ce * sm
    structure_loss = jnp.mean(ce) * structure_weight

    lp = jnp.asarray(predicts['loc_preds'], jnp.float32)
    lt = jnp.asarray(batch[2], jnp.float32)[:, 1:, :]
    lm = jnp.asarray(batch[4], jnp.float32)[:, 1:, :]
    loc_loss = jnp.mean((lp * lm - lt) ** 2) * loc_weight

    if not use_giou:
        return {'loss': structure_loss + loc_loss,
                'structure_loss': structure_loss, 'loc_loss': loc_loss}

    preds = (lp * lm).reshape(-1, 4)
    bbox = lt.reshape(-1, 4)
    eps = 1e-7
    ix1 = jnp.maximum(preds[:, 0], bbox[:, 0])
    iy1 = jnp.maximum(preds[:, 1], bbox[:, 1])
    ix2 = jnp.minimum(preds[:, 2], bbox[:, 2])
    iy2 = jnp.minimum(preds[:, 3], bbox[:, 3])
    iw = jnp.clip(ix2 - ix1 + 0.001, 0.0, 1e10)
    ih = jnp.clip(iy2 - iy1 + 0.001, 0.0, 1e10)
    inters = iw * ih
    uni = ((preds[:, 2] - preds[:, 0] + 0.001) * (preds[:, 3] - preds[:, 1] + 0.001)
           + (bbox[:, 2] - bbox[:, 0] + 0.001) * (bbox[:, 3] - bbox[:, 1] + 0.001)
           - inters + eps)
    ious = inters / uni
    ex1 = jnp.minimum(preds[:, 0], bbox[:, 0])
    ey1 = jnp.minimum(preds[:, 1], bbox[:, 1])
    ex2 = jnp.maximum(preds[:, 2], bbox[:, 2])
    ey2 = jnp.maximum(preds[:, 3], bbox[:, 3])
    ew = jnp.clip(ex2 - ex1 + 0.001, 0.0, 1e10)
    eh = jnp.clip(ey2 - ey1 + 0.001, 0.0, 1e10)
    enclose = ew * eh + eps
    giou = ious - (enclose - uni) / enclose
    loc_loss_giou = jnp.mean(1.0 - giou) * giou_weight
    return {'loss': structure_loss + loc_loss + loc_loss_giou,
            'structure_loss': structure_loss, 'loc_loss': loc_loss,
            'loc_loss_giou': loc_loss_giou}


# --------------------------------- main ------------------------------------- #

def _make_inputs(key, B, S, C):
    k1, k2, k3, k4, k5, k6 = jax.random.split(key, 6)
    structure_probs = jax.random.normal(k1, (B, S - 1, C), jnp.float32)
    loc_preds = jax.random.uniform(k2, (B, S - 1, 4), jnp.float32)
    structure_targets = jax.random.randint(k3, (B, S), 0, C, jnp.int32)
    loc_targets = jax.random.uniform(k4, (B, S, 4), jnp.float32)
    loc_targets_mask = (jax.random.uniform(k5, (B, S, 4)) > 0.2).astype(jnp.float32)
    structure_mask = (jax.random.uniform(k6, (B, S)) > 0.2).astype(jnp.int32)
    batch = [None, structure_targets, loc_targets, None, loc_targets_mask,
             structure_mask]
    predicts = {'structure_probs': structure_probs, 'loc_preds': loc_preds}
    return predicts, batch


if __name__ == "__main__":
    key = jax.random.PRNGKey(0)
    cfg = dict(structure_weight=1.0, loc_weight=2.0, use_giou=True,
               giou_weight=1.0)

    # ---- case 1: small shapes, single CE tile, with and without GIoU ----
    B, S, C = 2, 9, 32          # batch, seq (incl. SOS token), structure classes
    predicts, batch = _make_inputs(key, B, S, C)

    out = jax.block_until_ready(table_attention_loss(predicts, batch, **cfg))
    ref = jax.block_until_ready(_reference(predicts, batch, **cfg))
    for k in ref:
        assert jnp.allclose(out[k], ref[k], atol=1e-4, rtol=1e-4), (k, out[k], ref[k])

    out2 = jax.block_until_ready(
        table_attention_loss(predicts, batch, structure_weight=1.0,
                             loc_weight=2.0, use_giou=False))
    ref2 = _reference(predicts, batch, structure_weight=1.0, loc_weight=2.0,
                      use_giou=False)
    for k in ref2:
        assert jnp.allclose(out2[k], ref2[k], atol=1e-4, rtol=1e-4), (k, out2[k], ref2[k])

    # ---- case 2: force multi-tile grid with a ragged tail (18 rows, tile 8) ----
    predicts3, batch3 = _make_inputs(jax.random.PRNGKey(1), 2, 10, 32)
    out3 = jax.block_until_ready(
        table_attention_loss(predicts3, batch3, _force_tile_n=8, **cfg))
    ref3 = jax.block_until_ready(_reference(predicts3, batch3, **cfg))
    for k in ref3:
        assert jnp.allclose(out3[k], ref3[k], atol=1e-4, rtol=1e-4), (k, out3[k], ref3[k])

    print("KERNEL_OK")
</pallas_src>

<mosaic_0001>
module attributes {stable_mosaic.version = 11 : i64} {
  func.func @kernel(%arg0: i32, %arg1: memref<16x32xf32, #tpu.memory_space<vmem>>, %arg2: memref<16x1xi32, #tpu.memory_space<vmem>>, %arg3: memref<16x1xf32, #tpu.memory_space<vmem>>, %arg4: memref<4x128xf32, #tpu.memory_space<vmem>>, %arg5: memref<4x128xf32, #tpu.memory_space<vmem>>, %arg6: memref<4x128xf32, #tpu.memory_space<vmem>>, %arg7: memref<1x128xf32, #tpu.memory_space<vmem>>, %arg8: memref<1x1x128xf32, #tpu.memory_space<vmem>>, %arg9: memref<1x1x128xf32, #tpu.memory_space<vmem>>, %arg10: memref<1x1x128xf32, #tpu.memory_space<vmem>>) attributes {dimension_semantics = [#tpu.dimension_semantics<parallel>], iteration_bounds = array<i64: 1>, scalar_prefetch = 0 : i64, scratch_operands = 0 : i64, tpu.core_type = #tpu.core_type<tc>, window_params = [{transform_indices = @transform_0, window_bounds = array<i64: 16, 32>}, {transform_indices = @transform_1, window_bounds = array<i64: 16, 1>}, {transform_indices = @transform_2, window_bounds = array<i64: 16, 1>}, {pipeline_mode = #tpu.pipeline_mode<synchronous>, transform_indices = @transform_3, window_bounds = array<i64: 4, 128>}, {pipeline_mode = #tpu.pipeline_mode<synchronous>, transform_indices = @transform_4, window_bounds = array<i64: 4, 128>}, {pipeline_mode = #tpu.pipeline_mode<synchronous>, transform_indices = @transform_5, window_bounds = array<i64: 4, 128>}, {pipeline_mode = #tpu.pipeline_mode<synchronous>, transform_indices = @transform_6, window_bounds = array<i64: 1, 128>}, {transform_indices = @transform_7, window_bounds = array<i64: 1, 1, 128>}, {transform_indices = @transform_8, window_bounds = array<i64: 1, 1, 128>}, {transform_indices = @transform_9, window_bounds = array<i64: 1, 1, 128>}]} {
    %cst = arith.constant 0.000000e+00 : f32
    %0 = vector.broadcast %cst : f32 to vector<1x1x128xf32>
    %c0 = arith.constant 0 : index
    %c0_0 = arith.constant 0 : index
    %c0_1 = arith.constant 0 : index
    %1 = vector.load %arg9[%c0, %c0_0, %c0_1] : memref<1x1x128xf32, #tpu.memory_space<vmem>>, vector<1x1x128xf32>
    tpu.vector_store %arg9[%c0, %c0_0, %c0_1], %0 {strides = array<i32>} : memref<1x1x128xf32, #tpu.memory_space<vmem>>, vector<1x1x128xf32>,
    %cst_2 = arith.constant 0.000000e+00 : f32
    %2 = vector.broadcast %cst_2 : f32 to vector<1x1x128xf32>
    %c0_3 = arith.constant 0 : index
    %c0_4 = arith.constant 0 : index
    %c0_5 = arith.constant 0 : index
    %3 = vector.load %arg10[%c0_3, %c0_4, %c0_5] : memref<1x1x128xf32, #tpu.memory_space<vmem>>, vector<1x1x128xf32>
    tpu.vector_store %arg10[%c0_3, %c0_4, %c0_5], %2 {strides = array<i32>} : memref<1x1x128xf32, #tpu.memory_space<vmem>>, vector<1x1x128xf32>,
    %c0_6 = arith.constant 0 : index
    %c0_7 = arith.constant 0 : index
    %4 = vector.load %arg1[%c0_6, %c0_7] : memref<16x32xf32, #tpu.memory_space<vmem>>, vector<16x32xf32>
    %c0_8 = arith.constant 0 : index
    %c0_9 = arith.constant 0 : index
    %5 = vector.load %arg3[%c0_8, %c0_9] : memref<16x1xf32, #tpu.memory_space<vmem>>, vector<16x1xf32>
    %cst_10 = arith.constant dense<0xFF800000> : vector<16xf32>
    %6 = vector.multi_reduction <maximumf>, %4, %cst_10 [1] : vector<16x32xf32> to vector<16xf32>
    %7 = vector.shape_cast %6 : vector<16xf32> to vector<16x1xf32>
    %8 = vector.broadcast %7 : vector<16x1xf32> to vector<16x32xf32>
    %9 = arith.subf %4, %8 : vector<16x32xf32>
    %10 = math.exp %9 : vector<16x32xf32>
    %cst_11 = arith.constant dense<0.000000e+00> : vector<16xf32>
    %11 = vector.multi_reduction <add>, %10, %cst_11 [1] : vector<16x32xf32> to vector<16xf32>
    %12 = vector.shape_cast %11 : vector<16xf32> to vector<16x1xf32>
    %13 = math.log %12 : vector<16x1xf32>
    %14 = arith.addf %7, %13 : vector<16x1xf32>
    %15 = tpu.iota {dimensions = array<i32: 1>} : vector<16x32xi32>
    %c0_12 = arith.constant 0 : index
    %c0_13 = arith.constant 0 : index
    %16 = vector.load %arg2[%c0_12, %c0_13] : memref<16x1xi32, #tpu.memory_space<vmem>>, vector<16x1xi32>
    %17 = vector.broadcast %16 : vector<16x1xi32> to vector<16x32xi32>
    %18 = arith.cmpi eq, %15, %17 : vector<16x32xi32>
    %19 = arith.extui %18 : vector<16x32xi1> to vector<16x32xi32>
    %20 = arith.sitofp %19 : vector<16x32xi32> to vector<16x32xf32>
    %21 = arith.mulf %4, %20 : vector<16x32xf32>
    %cst_14 = arith.constant dense<0.000000e+00> : vector<16xf32>
    %22 = vector.multi_reduction <add>, %21, %cst_14 [1] : vector<16x32xf32> to vector<16xf32>
    %23 = vector.shape_cast %22 : vector<16xf32> to vector<16x1xf32>
    %24 = arith.subf %14, %23 : vector<16x1xf32>
    %25 = arith.mulf %24, %5 : vector<16x1xf32>
    %26 = vector.shape_cast %25 : vector<16x1xf32> to vector<1x16x1xf32>
    %cst_15 = arith.constant dense<0.000000e+00> : vector<1xf32>
    %27 = vector.multi_reduction <add>, %26, %cst_15 [1, 2] : vector<1x16x1xf32> to vector<1xf32>
    %28 = vector.shape_cast %27 : vector<1xf32> to vector<1x1x1xf32>
    %29 = vector.extract %28[0, 0, 0] : f32 from vector<1x1x1xf32>
    %30 = vector.broadcast %29 : f32 to vector<1x1x128xf32>
    %c0_16 = arith.constant 0 : index
    %c0_17 = arith.constant 0 : index
    %c0_18 = arith.constant 0 : index
    %31 = vector.load %arg8[%c0_16, %c0_17, %c0_18] : memref<1x1x128xf32, #tpu.memory_space<vmem>>, vector<1x1x128xf32>
    tpu.vector_store %arg8[%c0_16, %c0_17, %c0_18], %30 {strides = array<i32>} : memref<1x1x128xf32, #tpu.memory_space<vmem>>, vector<1x1x128xf32>,
    %c0_i32 = arith.constant 0 : i32
    %32 = arith.cmpi eq, %arg0, %c0_i32 : i32
    %33 = arith.extui %32 : i1 to i32
    %c0_i32_19 = arith.constant 0 : i32
    %34 = arith.cmpi ne, %33, %c0_i32_19 : i32
    scf.if %34 {
      %c0_20 = arith.constant 0 : index
      %c0_21 = arith.constant 0 : index
      %35 = vector.load %arg4[%c0_20, %c0_21] : memref<4x128xf32, #tpu.memory_space<vmem>>, vector<4x128xf32>
      %c0_22 = arith.constant 0 : index
      %c0_23 = arith.constant 0 : index
      %36 = vector.load %arg5[%c0_22, %c0_23] : memref<4x128xf32, #tpu.memory_space<vmem>>, vector<4x128xf32>
      %37 = arith.mulf %35, %36 : vector<4x128xf32>
      %c0_24 = arith.constant 0 : index
      %c0_25 = arith.constant 0 : index
      %38 = vector.load %arg6[%c0_24, %c0_25] : memref<4x128xf32, #tpu.memory_space<vmem>>, vector<4x128xf32>
      %c0_26 = arith.constant 0 : index
      %c0_27 = arith.constant 0 : index
      %39 = vector.load %arg7[%c0_26, %c0_27] : memref<1x128xf32, #tpu.memory_space<vmem>>, vector<1x128xf32>
      %40 = arith.subf %37, %38 : vector<4x128xf32>
      %41 = arith.mulf %40, %40 : vector<4x128xf32>
      %42 = vector.shape_cast %41 : vector<4x128xf32> to vector<1x4x128xf32>
      %cst_28 = arith.constant dense<0.000000e+00> : vector<1xf32>
      %43 = vector.multi_reduction <add>, %42, %cst_28 [1, 2] : vector<1x4x128xf32> to vector<1xf32>
      %44 = vector.shape_cast %43 : vector<1xf32> to vector<1x1x1xf32>
      %45 = vector.extract %44[0, 0, 0] : f32 from vector<1x1x1xf32>
      %46 = vector.broadcast %45 : f32 to vector<1x1x128xf32>
      %c0_29 = arith.constant 0 : index
      %c0_30 = arith.constant 0 : index
      %c0_31 = arith.constant 0 : index
      %47 = vector.load %arg9[%c0_29, %c0_30, %c0_31] : memref<1x1x128xf32, #tpu.memory_space<vmem>>, vector<1x1x128xf32>
      tpu.vector_store %arg9[%c0_29, %c0_30, %c0_31], %46 {strides = array<i32>} : memref<1x1x128xf32, #tpu.memory_space<vmem>>, vector<1x1x128xf32>,
      %48 = vector.extract_strided_slice %37 {offsets = [0, 0], sizes = [1, 128], strides = [1, 1]} : vector<4x128xf32> to vector<1x128xf32>
      %49 = vector.extract_strided_slice %37 {offsets = [1, 0], sizes = [1, 128], strides = [1, 1]} : vector<4x128xf32> to vector<1x128xf32>
      %50 = vector.extract_strided_slice %37 {offsets = [2, 0], sizes = [1, 128], strides = [1, 1]} : vector<4x128xf32> to vector<1x128xf32>
      %51 = vector.extract_strided_slice %37 {offsets = [3, 0], sizes = [1, 128], strides = [1, 1]} : vector<4x128xf32> to vector<1x128xf32>
      %52 = vector.extract_strided_slice %38 {offsets = [0, 0], sizes = [1, 128], strides = [1, 1]} : vector<4x128xf32> to vector<1x128xf32>
      %53 = vector.extract_strided_slice %38 {offsets = [1, 0], sizes = [1, 128], strides = [1, 1]} : vector<4x128xf32> to vector<1x128xf32>
      %54 = vector.extract_strided_slice %38 {offsets = [2, 0], sizes = [1, 128], strides = [1, 1]} : vector<4x128xf32> to vector<1x128xf32>
      %55 = vector.extract_strided_slice %38 {offsets = [3, 0], sizes = [1, 128], strides = [1, 1]} : vector<4x128xf32> to vector<1x128xf32>
      %56 = arith.maximumf %48, %52 : vector<1x128xf32>
      %57 = arith.maximumf %49, %53 : vector<1x128xf32>
      %58 = arith.minimumf %50, %54 : vector<1x128xf32>
      %59 = arith.minimumf %51, %55 : vector<1x128xf32>
      %60 = arith.subf %58, %56 : vector<1x128xf32>
      %cst_32 = arith.constant 1.000000e-03 : f32
      %61 = vector.broadcast %cst_32 : f32 to vector<1x128xf32>
      %62 = arith.addf %60, %61 : vector<1x128xf32>
      %cst_33 = arith.constant 0.000000e+00 : f32
      %63 = vector.broadcast %cst_33 : f32 to vector<1x128xf32>
      %64 = arith.maximumf %62, %63 : vector<1x128xf32>
      %65 = arith.subf %59, %57 : vector<1x128xf32>
      %cst_34 = arith.constant 1.000000e-03 : f32
      %66 = vector.broadcast %cst_34 : f32 to vector<1x128xf32>
      %67 = arith.addf %65, %66 : vector<1x128xf32>
      %cst_35 = arith.constant 0.000000e+00 : f32
      %68 = vector.broadcast %cst_35 : f32 to vector<1x128xf32>
      %69 = arith.maximumf %67, %68 : vector<1x128xf32>
      %70 = arith.mulf %64, %69 : vector<1x128xf32>
      %71 = arith.subf %50, %48 : vector<1x128xf32>
      %cst_36 = arith.constant 1.000000e-03 : f32
      %72 = vector.broadcast %cst_36 : f32 to vector<1x128xf32>
      %73 = arith.addf %71, %72 : vector<1x128xf32>
      %74 = arith.subf %51, %49 : vector<1x128xf32>
      %cst_37 = arith.constant 1.000000e-03 : f32
      %75 = vector.broadcast %cst_37 : f32 to vector<1x128xf32>
      %76 = arith.addf %74, %75 : vector<1x128xf32>
      %77 = arith.mulf %73, %76 : vector<1x128xf32>
      %78 = arith.subf %54, %52 : vector<1x128xf32>
      %cst_38 = arith.constant 1.000000e-03 : f32
      %79 = vector.broadcast %cst_38 : f32 to vector<1x128xf32>
      %80 = arith.addf %78, %79 : vector<1x128xf32>
      %81 = arith.subf %55, %53 : vector<1x128xf32>
      %cst_39 = arith.constant 1.000000e-03 : f32
      %82 = vector.broadcast %cst_39 : f32 to vector<1x128xf32>
      %83 = arith.addf %81, %82 : vector<1x128xf32>
      %84 = arith.mulf %80, %83 : vector<1x128xf32>
      %85 = arith.addf %77, %84 : vector<1x128xf32>
      %86 = arith.subf %85, %70 : vector<1x128xf32>
      %cst_40 = arith.constant 1.000000e-07 : f32
      %87 = vector.broadcast %cst_40 : f32 to vector<1x128xf32>
      %88 = arith.addf %86, %87 : vector<1x128xf32>
      %89 = arith.divf %70, %88 : vector<1x128xf32>
      %90 = arith.minimumf %48, %52 : vector<1x128xf32>
      %91 = arith.minimumf %49, %53 : vector<1x128xf32>
      %92 = arith.maximumf %50, %54 : vector<1x128xf32>
      %93 = arith.maximumf %51, %55 : vector<1x128xf32>
      %94 = arith.subf %92, %90 : vector<1x128xf32>
      %cst_41 = arith.constant 1.000000e-03 : f32
      %95 = vector.broadcast %cst_41 : f32 to vector<1x128xf32>
      %96 = arith.addf %94, %95 : vector<1x128xf32>
      %cst_42 = arith.constant 0.000000e+00 : f32
      %97 = vector.broadcast %cst_42 : f32 to vector<1x128xf32>
      %98 = arith.maximumf %96, %97 : vector<1x128xf32>
      %99 = arith.subf %93, %91 : vector<1x128xf32>
      %cst_43 = arith.constant 1.000000e-03 : f32
      %100 = vector.broadcast %cst_43 : f32 to vector<1x128xf32>
      %101 = arith.addf %99, %100 : vector<1x128xf32>
      %cst_44 = arith.constant 0.000000e+00 : f32
      %102 = vector.broadcast %cst_44 : f32 to vector<1x128xf32>
      %103 = arith.maximumf %101, %102 : vector<1x128xf32>
      %104 = arith.mulf %98, %103 : vector<1x128xf32>
      %cst_45 = arith.constant 1.000000e-07 : f32
      %105 = vector.broadcast %cst_45 : f32 to vector<1x128xf32>
      %106 = arith.addf %104, %105 : vector<1x128xf32>
      %107 = arith.subf %106, %88 : vector<1x128xf32>
      %108 = arith.divf %107, %106 : vector<1x128xf32>
      %109 = arith.subf %89, %108 : vector<1x128xf32>
      %cst_46 = arith.constant 1.000000e+00 : f32
      %110 = vector.broadcast %cst_46 : f32 to vector<1x128xf32>
      %111 = arith.subf %110, %109 : vector<1x128xf32>
      %112 = arith.mulf %111, %39 : vector<1x128xf32>
      %113 = vector.shape_cast %112 : vector<1x128xf32> to vector<1x1x128xf32>
      %cst_47 = arith.constant dense<0.000000e+00> : vector<1xf32>
      %114 = vector.multi_reduction <add>, %113, %cst_47 [1, 2] : vector<1x1x128xf32> to vector<1xf32>
      %115 = vector.shape_cast %114 : vector<1xf32> to vector<1x1x1xf32>
      %116 = vector.extract %115[0, 0, 0] : f32 from vector<1x1x1xf32>
      %117 = vector.broadcast %116 : f32 to vector<1x1x128xf32>
      %c0_48 = arith.constant 0 : index
      %c0_49 = arith.constant 0 : index
      %c0_50 = arith.constant 0 : index
      %118 = vector.load %arg10[%c0_48, %c0_49, %c0_50] : memref<1x1x128xf32, #tpu.memory_space<vmem>>, vector<1x1x128xf32>
      tpu.vector_store %arg10[%c0_48, %c0_49, %c0_50], %117 {strides = array<i32>} : memref<1x1x128xf32, #tpu.memory_space<vmem>>, vector<1x1x128xf32>,
    } else {
    }
    return
  }
  func.func @transform_0(%arg0: i32) -> (i32, i32) {
    %c0_i32 = arith.constant 0 : i32
    %c0_i32_0 = arith.constant 0 : i32
    return %arg0, %c0_i32 : i32, i32
  }
  func.func @transform_1(%arg0: i32) -> (i32, i32) {
    %c0_i32 = arith.constant 0 : i32
    %c0_i32_0 = arith.constant 0 : i32
    return %arg0, %c0_i32 : i32, i32
  }
  func.func @transform_2(%arg0: i32) -> (i32, i32) {
    %c0_i32 = arith.constant 0 : i32
    %c0_i32_0 = arith.constant 0 : i32
    return %arg0, %c0_i32 : i32, i32
  }
  func.func @transform_3(%arg0: i32) -> (i32, i32) {
    %c0_i32 = arith.constant 0 : i32
    %c0_i32_0 = arith.constant 0 : i32
    %c0_i32_1 = arith.constant 0 : i32
    return %c0_i32, %c0_i32_0 : i32, i32
  }
  func.func @transform_4(%arg0: i32) -> (i32, i32) {
    %c0_i32 = arith.constant 0 : i32
    %c0_i32_0 = arith.constant 0 : i32
    %c0_i32_1 = arith.constant 0 : i32
    return %c0_i32, %c0_i32_0 : i32, i32
  }
  func.func @transform_5(%arg0: i32) -> (i32, i32) {
    %c0_i32 = arith.constant 0 : i32
    %c0_i32_0 = arith.constant 0 : i32
    %c0_i32_1 = arith.constant 0 : i32
    return %c0_i32, %c0_i32_0 : i32, i32
  }
  func.func @transform_6(%arg0: i32) -> (i32, i32) {
    %c0_i32 = arith.constant 0 : i32
    %c0_i32_0 = arith.constant 0 : i32
    %c0_i32_1 = arith.constant 0 : i32
    return %c0_i32, %c0_i32_0 : i32, i32
  }
  func.func @transform_7(%arg0: i32) -> (i32, i32, i32) {
    %c0_i32 = arith.constant 0 : i32
    %c0_i32_0 = arith.constant 0 : i32
    %c0_i32_1 = arith.constant 0 : i32
    return %arg0, %c0_i32, %c0_i32_0 : i32, i32, i32
  }
  func.func @transform_8(%arg0: i32) -> (i32, i32, i32) {
    %c0_i32 = arith.constant 0 : i32
    %c0_i32_0 = arith.constant 0 : i32
    %c0_i32_1 = arith.constant 0 : i32
    return %arg0, %c0_i32, %c0_i32_0 : i32, i32, i32
  }
  func.func @transform_9(%arg0: i32) -> (i32, i32, i32) {
    %c0_i32 = arith.constant 0 : i32
    %c0_i32_0 = arith.constant 0 : i32
    %c0_i32_1 = arith.constant 0 : i32
    return %arg0, %c0_i32, %c0_i32_0 : i32, i32, i32
  }
}

</mosaic_0001>

<llo_original>
// kernel: tpu_custom_call.1
$region0: #{tpu_custom_call.1}
  #allocation0 [shape = 'u32[]', space=smem, size = 0x4, offset = 0x4, fixed_abs, tag = 'smem constant byte address 0x4 - core index']
  #allocation1 [shape = 'u32[144,128]{1,0:T(1,128)}', space=vmem, size = 0x12000, scoped, tag = 'internal scratch']
  %s0 = inlined_call_operand.vmem [shape: f32[16,32], index: 0, kind: input, shape index: {}]
  %s1 = inlined_call_operand.vmem [shape: s32[16,1], index: 1, kind: input, shape index: {}]
  %s2 = inlined_call_operand.vmem [shape: f32[16,1], index: 2, kind: input, shape index: {}]
  %s3 = inlined_call_operand.vmem [shape: f32[4,128], index: 3, kind: input, shape index: {}]
  %s4 = inlined_call_operand.vmem [shape: f32[4,128], index: 4, kind: input, shape index: {}]
  %s5 = inlined_call_operand.vmem [shape: f32[4,128], index: 5, kind: input, shape index: {}]
  %s6 = inlined_call_operand.vmem [shape: f32[1,128], index: 6, kind: input, shape index: {}]
  %s7 = inlined_call_operand.hbm [shape: f32[1,1,128], index: 7, kind: output, shape index: {0}]
  %s8 = inlined_call_operand.hbm [shape: f32[1,1,128], index: 8, kind: output, shape index: {1}]
  %s9 = inlined_call_operand.hbm [shape: f32[1,1,128], index: 9, kind: output, shape index: {2}]
  %10 = xla_tuple %s7, %s8, %s9
  %s11 = sld [smem:[#allocation0]]
  $region58: #{tpu_custom_call.1} parent=0
    _
  %s13 = ssub.s32 1, %s11
  %s14 = scalar_select 0, %s13, %s11
  $region1: #{tpu_custom_call.1} parent=0
    #allocation2 [shape = 'u8[512]{0}', space=vmem, size = 0x400, scoped, tag = 'output window, operand 0, single buffered']
    #allocation3 [shape = 's32[1]{0}', space=sflag, size = 0x4, scoped, tag = 'scoped memory for tpu_custom_call.1']
    #allocation4 [shape = 'u8[512]{0}', space=vmem, size = 0x400, scoped, tag = 'output window, operand 1, single buffered']
    #allocation5 [shape = 's32[1]{0}', space=sflag, size = 0x4, scoped, tag = 'scoped memory for tpu_custom_call.1']
    #allocation6 [shape = 'u8[512]{0}', space=vmem, size = 0x400, scoped, tag = 'output window, operand 2, single buffered']
    %15 = vsyncpa [#allocation3], 0
    %16 = vsyncpa [#allocation5], 0
    // Predicated region
    $region2: #{tpu_custom_call.1} parent=1 // pred_check
      _
    $region3: #{tpu_custom_call.1} parent=1 // pred_check_branch
      %18 = sbr.rel (0) target = $region5
    $region4: #{tpu_custom_call.1} parent=1 // pred_region
      _
    $region5: #{tpu_custom_call.1} parent=1 // pred_fallthru
      _
    // Predicated region
    $region6: #{tpu_custom_call.1} parent=1 // pred_check
      _
    $region7: #{tpu_custom_call.1} parent=1 // pred_check_branch
      %20 = sbr.rel (0) target = $region9
    $region8: #{tpu_custom_call.1} parent=1 // pred_region
      _
    $region9: #{tpu_custom_call.1} parent=1 // pred_fallthru
      _
    // Predicated region
    $region10: #{tpu_custom_call.1} parent=1 // pred_check
      _
    $region11: #{tpu_custom_call.1} parent=1 // pred_check_branch
      %22 = sbr.rel (0) target = $region13
    $region12: #{tpu_custom_call.1} parent=1 // pred_region
      _
    $region13: #{tpu_custom_call.1} parent=1 // pred_fallthru
      _
    // Predicated region
    $region14: #{tpu_custom_call.1} parent=1 // pred_check
      _
    $region15: #{tpu_custom_call.1} parent=1 // pred_check_branch
      %24 = sbr.rel (0) target = $region17
    $region16: #{tpu_custom_call.1} parent=1 // pred_region
      _
    $region17: #{tpu_custom_call.1} parent=1 // pred_fallthru
      _
    // Predicated region
    $region18: #{tpu_custom_call.1} parent=1 // pred_check
      _
    $region19: #{tpu_custom_call.1} parent=1 // pred_check_branch
      %26 = sbr.rel (0) target = $region21
    $region20: #{tpu_custom_call.1} parent=1 // pred_region
      _
    $region21: #{tpu_custom_call.1} parent=1 // pred_fallthru
      _
    // Predicated region
    $region22: #{tpu_custom_call.1} parent=1 // pred_check
      _
    $region23: #{tpu_custom_call.1} parent=1 // pred_check_branch
      %28 = sbr.rel (0) target = $region25
    $region24: #{tpu_custom_call.1} parent=1 // pred_region
      _
    $region25: #{tpu_custom_call.1} parent=1 // pred_fallthru
      _
    // Predicated region
    $region26: #{tpu_custom_call.1} parent=1 // pred_check
      _
    $region27: #{tpu_custom_call.1} parent=1 // pred_check_branch
      %30 = sbr.rel (0) target = $region29
    $region28: #{tpu_custom_call.1} parent=1 // pred_region
      _
    $region29: #{tpu_custom_call.1} parent=1 // pred_fallthru
      _
    %31 = vst [vmem:[#allocation4] sm:$0x1] 0.0
    %32 = vst [vmem:[#allocation6] sm:$0x1] 0.0
    %v33 = vld [vmem:[%s0] sm:$0xff]
    %v34 = vld [vmem:[%s0 + $0x8] sm:$0xff]
    %v35 = vld [vmem:[%s2] sm:$0xff]
    %v36 = vld [vmem:[%s2 + $0x8] sm:$0xff]
    %vm37 = vcmask 261120
    %v38 = vsel %vm37, %v33, -inf
    %39 = vmax.xlane.f32.xlu0 %v38
    %v40 = vpop.xlane.xlu0 %39
    %v41 = vsel %vm37, %v34, -inf
    %42 = vmax.xlane.f32.xlu0 %v41
    %v43 = vpop.xlane.xlu0 %42
    %v44 = vsub.f32 %v33, %v40
    %v45 = vsub.f32 %v34, %v43
    %v46 = vmul.f32 %v44, 1.442695
    %v47 = vpow.pop %v46
    %v48 = vmul.f32 %v45, 1.442695
    %v49 = vpow.pop %v48
    %v50 = vsel %vm37, %v47, 0.0
    %51 = vadd.xlane.f32.xlu0 %v50
    %v52 = vpop.xlane.xlu0 %51
    %v53 = vsel %vm37, %v49, 0.0
    %54 = vadd.xlane.f32.xlu0 %v53
    %v55 = vpop.xlane.xlu0 %54
    %v56 = vlog2.pop %v52
    %v57 = vmul.f32 %v56, 0.6931472
    %v58 = vlog2.pop %v55
    %v59 = vmul.f32 %v58, 0.6931472
    %v60 = vadd.f32 %v40, %v57
    %v61 = vadd.f32 %v43, %v59
    %v62 = vlaneseq
    %v63 = vand.u32 %v62, 127
    %v64 = vld [vmem:[%s1] sm:$0xff]
    %v65 = vld [vmem:[%s1 + $0x8] sm:$0xff]
    %66 = vset.pattern.permute.xlu0 0
    %67 = vperm.xlu0 %66, %v64
    %v68 = vpop.permute.xlu0 %67
    %69 = vset.pattern.permute.xlu0 0
    %70 = vperm.xlu0 %69, %v65
    %v71 = vpop.permute.xlu0 %70
    %vm72 = vcmp.eq.s32.totalorder %v63, %v68
    %vm73 = vcmp.eq.s32.totalorder %v63, %v71
    %v74 = vsel %vm72, 1, 0
    %v75 = vsel %vm73, 1, 0
    %v76 = vcvt.s32.f32 %v74
    %v77 = vcvt.s32.f32 %v75
    %v78 = vmul.f32 %v33, %v76
    %v79 = vmul.f32 %v34, %v77
    %v80 = vsel %vm37, %v78, 0.0
    %81 = vadd.xlane.f32.xlu0 %v80
    %v82 = vpop.xlane.xlu0 %81
    %v83 = vsel %vm37, %v79, 0.0
    %84 = vadd.xlane.f32.xlu0 %v83
    %v85 = vpop.xlane.xlu0 %84
    %v86 = vsub.f32 %v60, %v82
    %v87 = vsub.f32 %v61, %v85
    %v88 = vmul.f32 %v86, %v35
    %v89 = vmul.f32 %v87, %v36
    %vm90 = vcmask 7168
    %v91 = vsel %vm90, %v88, 0.0
    %v92 = vsel %vm90, %v89, 0.0
    %v93 = vadd.f32 %v91, %v92
    %94 = vadd.xlane.f32.xlu0 %v93
    %v95 = vpop.xlane.xlu0 %94
    %v96 = vrot.slane %v95, 4
    %v97 = vadd.f32 %v95, %v96
    %v98 = vrot.slane %v97, 2
    %v99 = vadd.f32 %v97, %v98
    %v100 = vrot.slane %v99, 1
    %v101 = vadd.f32 %v99, %v100
    %s102 = vtos %v101
    %v103 = vstv %s102
    %104 = vst [vmem:[#allocation2] sm:$0x1] %v103
    %p105 = scmp.eq.s32.totalorder 0, 0
    // Predicated region
    $region30: #{tpu_custom_call.1} parent=1 // pred_check
      %p106 = pneg %p105
    $region31: #{tpu_custom_call.1} parent=1 // pred_check_branch
      %108 = sbr.rel (%p106) target = $region33
    $region32: #{tpu_custom_call.1} parent=1 // pred_region
      %v109 = vld [vmem:[%s3] sm:$0xf]
      %v110 = vld [vmem:[%s4] sm:$0xf]
      %v111 = vmul.f32 %v109, %v110
      %v112 = vld [vmem:[%s5] sm:$0xf]
      %v113 = vld [vmem:[%s6] sm:$0x1]
      %v114 = vsub.f32 %v111, %v112
      %v115 = vmul.f32 %v114, %v114
      %vm116 = vcmask 1043456
      %v117 = vsel %vm116, %v115, 0.0
      %118 = vadd.xlane.f32.xlu0 %v117
      %v119 = vpop.xlane.xlu0 %118
      %v120 = vrot.slane %v119, 4
      %v121 = vadd.f32 %v119, %v120
      %v122 = vrot.slane %v121, 2
      %v123 = vadd.f32 %v121, %v122
      %v124 = vrot.slane %v123, 1
      %v125 = vadd.f32 %v123, %v124
      %s126 = vtos %v125
      %v127 = vstv %s126
      %128 = vst [vmem:[#allocation4] sm:$0x1] %v127
      %v129 = vmax.f32 %v111, %v112
      %v130 = vmin.f32 %v111, %v112
      %v132 = vrot.slane %v129, 6
      %v134 = vsub.f32 %v130, %v132
      %v135 = vadd.f32 %v134, 0.001
      %v136 = vmax.f32 %v135, 0.0
      %v138 = vrot.slane %v136, 1
      %v140 = vmul.f32 %v136, %v138
      %v142 = vrot.slane %v111, 6
      %v144 = vsub.f32 %v111, %v142
      %v145 = vadd.f32 %v144, 0.001
      %v147 = vrot.slane %v145, 1
      %v149 = vmul.f32 %v145, %v147
      %v151 = vrot.slane %v112, 6
      %v153 = vsub.f32 %v112, %v151
      %v154 = vadd.f32 %v153, 0.001
      %v156 = vrot.slane %v154, 1
      %v158 = vmul.f32 %v154, %v156
      %v159 = vadd.f32 %v149, %v158
      %v160 = vsub.f32 %v159, %v140
      %v161 = vadd.f32 %v160, 1e-07
      %v162 = vrcp.pop %v161
      %v163 = vmul.f32 %v140, %v162
      %v165 = vrot.slane %v130, 6
      %v167 = vsub.f32 %v129, %v165
      %v168 = vadd.f32 %v167, 0.001
      %v169 = vmax.f32 %v168, 0.0
      %v171 = vrot.slane %v169, 1
      %v173 = vmul.f32 %v169, %v171
      %v174 = vadd.f32 %v173, 1e-07
      %v175 = vsub.f32 %v174, %v161
      %v176 = vrcp.pop %v174
      %v177 = vmul.f32 %v175, %v176
      %v178 = vsub.f32 %v163, %v177
      %v179 = vsub.f32 1.0, %v178
      %v181 = vlaneseq
      %v182 = vshrl.u32 %v181, 7
      %v183 = vsub.s32 0, %v182
      %v184 = vrot.slane %v113, %v183
      %v186 = vmul.f32 %v179, %v184
      %v188 = vrot.slane %v186, 2
      %vm190 = vcmask 1040384
      %v191 = vsel %vm190, %v188, 0.0
      %192 = vadd.xlane.f32.xlu0 %v191
      %v193 = vpop.xlane.xlu0 %192
      %v194 = vrot.slane %v193, 4
      %v195 = vadd.f32 %v193, %v194
      %v196 = vrot.slane %v195, 2
      %v197 = vadd.f32 %v195, %v196
      %v198 = vrot.slane %v197, 1
      %v199 = vadd.f32 %v197, %v198
      %s200 = vtos %v199
      %v201 = vstv %s200
      %202 = vst [vmem:[#allocation6] sm:$0x1] %v201
    $region33: #{tpu_custom_call.1} parent=1 // pred_fallthru
      _
    // Predicated region
    $region34: #{tpu_custom_call.1} parent=1 // pred_check
      _
    $region35: #{tpu_custom_call.1} parent=1 // pred_check_branch
      %204 = sbr.rel (0) target = $region37
    $region36: #{tpu_custom_call.1} parent=1 // pred_region
      %s206 = ssub.s32 16, 16
      %207 = vsyncadd [#allocation3], %s206
      %s209 = sshll.u32 [#allocation2], 4
      %s210 = int_to_ptr.vmem [resolvable:$true] %s209
      %212 = dma.vmem_to_hbm [thread:$0]  %s210, 16, %s7, [#allocation3]
    $region37: #{tpu_custom_call.1} parent=1 // pred_fallthru
      _
    // Predicated region
    $region38: #{tpu_custom_call.1} parent=1 // pred_check
      _
    $region39: #{tpu_custom_call.1} parent=1 // pred_check_branch
      %214 = sbr.rel (0) target = $region41
    $region40: #{tpu_custom_call.1} parent=1 // pred_region
      %s216 = ssub.s32 16, 16
      %217 = vsyncadd [#allocation5], %s216
      %s219 = sshll.u32 [#allocation4], 4
      %s220 = int_to_ptr.vmem [resolvable:$true] %s219
      %222 = dma.vmem_to_hbm [thread:$0]  %s220, 16, %s8, [#allocation5]
    $region41: #{tpu_custom_call.1} parent=1 // pred_fallthru
      _
    // Predicated region
    $region42: #{tpu_custom_call.1} parent=1 // pred_check
      _
    $region43: #{tpu_custom_call.1} parent=1 // pred_check_branch
      %224 = sbr.rel (0) target = $region45
    $region44: #{tpu_custom_call.1} parent=1 // pred_region
      %s226 = ssub.s32 16, 16
      %227 = vsyncadd [#allocation5], %s226
      %s229 = sshll.u32 [#allocation6], 4
      %s230 = int_to_ptr.vmem [resolvable:$true] %s229
      %232 = dma.vmem_to_hbm [thread:$0]  %s230, 16, %s9, [#allocation5]
    $region45: #{tpu_custom_call.1} parent=1 // pred_fallthru
      _
    // Predicated region
    $region46: #{tpu_custom_call.1} parent=1 // pred_check
      _
    $region47: #{tpu_custom_call.1} parent=1 // pred_check_branch
      %234 = sbr.rel (0) target = $region49
    $region48: #{tpu_custom_call.1} parent=1 // pred_region
      %235 = dma.done [#allocation3], 16
    $region49: #{tpu_custom_call.1} parent=1 // pred_fallthru
      _
    // Predicated region
    $region50: #{tpu_custom_call.1} parent=1 // pred_check
      _
    $region51: #{tpu_custom_call.1} parent=1 // pred_check_branch
      %237 = sbr.rel (0) target = $region53
    $region52: #{tpu_custom_call.1} parent=1 // pred_region
      %238 = dma.done [#allocation5], 16
    $region53: #{tpu_custom_call.1} parent=1 // pred_fallthru
      _
    // Predicated region
    $region54: #{tpu_custom_call.1} parent=1 // pred_check
      _
    $region55: #{tpu_custom_call.1} parent=1 // pred_check_branch
      %240 = sbr.rel (0) target = $region57
    $region56: #{tpu_custom_call.1} parent=1 // pred_region
      %241 = dma.done [#allocation5], 16
    $region57: #{tpu_custom_call.1} parent=1 // pred_fallthru
      _
    %242 = vsyncpa [#allocation3], 1
    %243 = vsyncpa [#allocation5], 1

</llo_original>
